<compile_context>
chip_gen: v7x
topology: tpu7x:2x2x1
jax: 0.10.0
libtpu: 0.0.40
codegen_flags: <defaults>
</compile_context>

<pallas_src>
import functools

import jax
import jax.numpy as jnp
import numpy as np
from jax.experimental import pallas as pl
from jax.experimental.pallas import tpu as pltpu


def _round_up(x, m):
    return (x + m - 1) // m * m


def _vmem_capacity_bytes():
    """Physical VMEM of the attached chip; never silently halves v5e/v6e tiles."""
    try:
        return int(pltpu.get_tpu_info().vmem_capacity_bytes)
    except Exception:
        pass
    try:
        kind = jax.devices()[0].device_kind.lower()
    except Exception:
        kind = ""
    if "v7" in kind or "7x" in kind:
        return 64 * 1024 * 1024
    return 128 * 1024 * 1024          # v5e / v6e (and older) expose 128 MiB


def _pick_fold(rows, tok_len, max_fold):
    """Best divisor F of `rows` for the free reshape (R, L) -> (R//F, F*L).

    Folding packs F consecutive (batch, candidate) rows onto the lane axis so
    short/odd L does not waste 128-wide lanes; the score is the vreg utilisation
    (lanes *and* sublanes) of the folded layout. Pass max_fold=1 to disable.
    """
    cap = max(1, 1024 // max(1, tok_len))          # keep folded width modest
    if max_fold is not None:
        cap = min(cap, max(1, int(max_fold)))

    def util(f):
        return (rows * tok_len) / float(
            _round_up(rows // f, 8) * _round_up(f * tok_len, 128))

    best_f, best_u = 1, util(1)
    for f in range(2, min(cap, rows) + 1):
        if rows % f:
            continue
        u = util(f)
        if u > best_u + 1e-9:
            best_f, best_u = f, u
    return best_f


def _reinforce_tile_kernel(seq_ref, logp_ref, base_ref, rew_ref, out_ref, *,
                           tok_len, fold, rows_rem):
    """One row tile -> out_ref[0] = [[sum(adv*(adv-logp)*mask)]x128, [sum(mask)]x128]."""
    seq = seq_ref[...]                                   # (TR, W) token ids
    if seq.dtype != jnp.int32:                           # narrow ids stream narrow in
        seq = seq.astype(jnp.int32)                      # HBM; widen on the VPU only
    logp = logp_ref[...].astype(jnp.float32)             # (TR, W)
    base = base_ref[...].astype(jnp.float32)             # (TR, W)
    rew = rew_ref[...].astype(jnp.float32)               # (TR, F)

    tile_rows, width = logp.shape                        # static block shape

    # ---- sub-row-start mask + reward broadcast, built on tiny (F, W)/(1, W)
    #      constants (no block-sized iota temporaries). ----------------------
    if fold == 1:
        start = jax.lax.broadcasted_iota(jnp.int32, (1, width), 1) == 0
        rew_b = rew                                      # (TR, 1): lane broadcast
    else:
        lane = jax.lax.broadcasted_iota(jnp.int32, (fold, width), 1)
        seg_lo = jax.lax.broadcasted_iota(jnp.int32, (fold, width), 0) * tok_len
        # expand[k, t] = 1 iff lane t belongs to sub-row k (segment [kL, (k+1)L))
        expand = jnp.logical_and(lane >= seg_lo, lane < seg_lo + tok_len)
        expand = expand.astype(jnp.float32)              # (F, W) constant
        start = jnp.sum(jnp.where(lane == seg_lo, 1.0, 0.0),
                        axis=0, keepdims=True) > 0.5     # (1, W) sub-row starts
        # one reward per sub-row, spread over its L lanes on the (idle) MXU
        rew_b = jnp.dot(rew, expand, preferred_element_type=jnp.float32)  # (TR, W)

    # mask[:, t] = 1 at a sub-row start, else (seq[:, t-1] > 0); the lane-roll
    # wrap-around / cross-sub-row leak is exactly the set of lanes overridden by
    # `start` (this also covers the module's L == 1 "mask.fill_(1)" case).
    rolled = pltpu.roll(seq, shift=1, axis=1)            # XLU lane rotate (free slot)
    tok_ok = jnp.logical_or(start, rolled > 0)           # (TR, W) via sublane bcast

    adv = rew_b - base
    fused = adv * (adv - logp)                           # adv^2 + (-logp)*adv

    def emit(ok):
        # select (not multiply) so garbage/NaN in out-of-bounds rows is dropped;
        # the denominator uses the same guarded mask so padded rows never count.
        num = jnp.sum(jnp.where(ok, fused, 0.0))         # scalar partials
        den = jnp.sum(ok.astype(jnp.float32))
        srow = jax.lax.broadcasted_iota(jnp.int32, (2, 128), 0)
        out_ref[0] = jnp.where(srow == 0, num, den)      # lane-dense (2, 128) store

    if rows_rem == 0:                                    # static: grid divides evenly
        emit(tok_ok)
    else:
        last = pl.num_programs(0) - 1

        @pl.when(pl.program_id(0) != last)
        def _():                                         # steady state: no row guard
            emit(tok_ok)

        @pl.when(pl.program_id(0) == last)
        def _():                                         # ragged tail only
            rguard = (jax.lax.broadcasted_iota(jnp.int32, (tile_rows, 1), 0)
                      < rows_rem)
            emit(jnp.logical_and(tok_ok, rguard))


def reinforce_criterion(seq, seq_log_probs, baseline, rewards, *,
                        max_tile_rows=None, max_fold=None):
    """Returns (action_loss + value_loss, avg_reward) as scalar f32 arrays.

    seq / seq_log_probs / baseline: (B, K, L); rewards: (B, K).
    seq may be int32/int16/int8; seq_log_probs / baseline may be f32 or bf16 —
    all stream at their native HBM width and are widened inside the kernel.
    """
    # TODO(synk): the `rewards is None` branch of the original module calls an
    # external caption evaluator (CIDEr/BLEU over path2inst); it has no Pallas
    # equivalent, so only the rewards-provided branch is implemented.
    assert seq.shape == seq_log_probs.shape == baseline.shape
    assert rewards.shape == seq.shape[:2]
    B, K, L = seq.shape
    R = B * K

    # ---- lane folding (free contiguous reshapes; no HBM copies) --------------
    fold = _pick_fold(R, L, max_fold)
    Rf, W = R // fold, fold * L

    seq2 = seq.reshape(Rf, W)                              # native dtype, no astype
    logp2 = seq_log_probs.reshape(Rf, W)
    base2 = baseline.reshape(Rf, W)
    rew2 = rewards.astype(jnp.float32).reshape(Rf, fold)   # tiny (R scalars)

    isz = lambda a: jnp.dtype(a.dtype).itemsize

    # ---- tile sizing: as many rows as fit VMEM (no artificial row cap) -------
    vmem_cap = _vmem_capacity_bytes()
    vmem_limit = min(vmem_cap - (16 << 20), (vmem_cap * 3) // 4)  # 96M / 48M (v7x)
    block_budget = (vmem_limit * 3) // 4       # slack for Mosaic-internal scratch

    w_pad = _round_up(W, 128)
    f_pad = _round_up(fold, 128)
    in_row = w_pad * (isz(seq2) + isz(logp2) + isz(base2)) + f_pad * 4
    tmp_row = 8 * w_pad * 4                    # ~8 live block-sized f32 temporaries
    per_row = 2 * in_row + tmp_row             # double-buffered inputs + temporaries

    fit_rows = max(32, (block_budget // per_row) // 32 * 32)   # 32: int8/bf16 pack
    if max_tile_rows is not None:
        fit_rows = min(fit_rows, max(8, (int(max_tile_rows) // 8) * 8))
    tile_rows = Rf if fit_rows >= Rf else fit_rows
    num_tiles = pl.cdiv(Rf, tile_rows)
    rows_rem = Rf % tile_rows                  # static; > 0 only for a ragged tail

    kernel = functools.partial(_reinforce_tile_kernel,
                               tok_len=L, fold=fold, rows_rem=rows_rem)

    n_elem = R * L
    cost = pl.CostEstimate(
        flops=(12 + (2 * fold if fold > 1 else 0)) * n_elem,
        transcendentals=0,
        bytes_accessed=(n_elem * (isz(seq2) + isz(logp2) + isz(base2))
                        + R * 4 + num_tiles * 2 * 128 * 4),
    )

    def row_spec(width):
        return pl.BlockSpec((tile_rows, width), lambda i: (i, 0))

    parts = pl.pallas_call(
        kernel,
        grid=(num_tiles,),
        in_specs=[row_spec(W), row_spec(W), row_spec(W), row_spec(fold)],
        out_specs=pl.BlockSpec((1, 2, 128), lambda i: (i, 0, 0)),
        out_shape=jax.ShapeDtypeStruct((num_tiles, 2, 128), jnp.float32),
        compiler_params=pltpu.CompilerParams(
            # row tiles are independent -> megacore-shardable on v7x
            dimension_semantics=("parallel",),
            vmem_limit_bytes=int(vmem_limit),
        ),
        cost_estimate=cost,
    )(seq2, logp2, base2, rew2)

    num_tot = jnp.sum(parts[:, 0, 0])
    den_tot = jnp.sum(parts[:, 1, 0])
    loss = num_tot / den_tot
    avg_reward = jnp.mean(rewards.astype(jnp.float32))
    return loss, avg_reward


def _reference(seq, seq_log_probs, baseline, rewards):
    """Pure-JAX forward reference mirroring the PyTorch module."""
    B, K, L = seq.shape
    valid = (seq > 0).astype(jnp.float32)
    if L > 1:
        mask = jnp.concatenate(
            [jnp.ones((B, K, 1), jnp.float32), valid[:, :, :-1]], axis=2)
    else:
        mask = jnp.ones_like(valid)
    r = rewards.reshape(B, K, 1).astype(jnp.float32)
    adv = r - baseline.astype(jnp.float32)
    value_loss = jnp.sum(adv * adv * mask) / jnp.sum(mask)
    action_loss = (jnp.sum(-seq_log_probs.astype(jnp.float32) * adv * mask)
                   / jnp.sum(mask))
    return action_loss + value_loss, jnp.mean(rewards.astype(jnp.float32))


if __name__ == "__main__":
    def make_inputs(key, B, K, L, prob_dtype=jnp.float32, seq_dtype=jnp.int32):
        k_seq, k_lp, k_bl, k_rw = jax.random.split(key, 4)
        seq = jax.random.randint(k_seq, (B, K, L), 0, 6, dtype=jnp.int32)  # 0 = pad
        seq = seq.astype(seq_dtype)
        logp = -jax.nn.softplus(jax.random.normal(k_lp, (B, K, L))).astype(prob_dtype)
        base = jax.random.normal(k_bl, (B, K, L)).astype(prob_dtype)
        rew = jax.random.uniform(k_rw, (B, K), dtype=jnp.float32)
        return seq, logp, base, rew

    def check(args, kw, rtol, atol):
        loss, avg = reinforce_criterion(*args, **kw)
        jax.block_until_ready((loss, avg))
        ref_loss, ref_avg = _reference(*args)
        np.testing.assert_allclose(np.asarray(loss), np.asarray(ref_loss),
                                   rtol=rtol, atol=atol)
        np.testing.assert_allclose(np.asarray(avg), np.asarray(ref_avg),
                                   rtol=1e-6, atol=1e-6)

    # 1) module-default small shape (batch, 5 candidates, short seq):
    #    exercises the lane-fold path (fold > 1) with a single row tile.
    check(make_inputs(jax.random.PRNGKey(0), 2, 5, 8), {}, 1e-5, 1e-5)

    # 2) no fold, odd L, multi-tile grid with a ragged last row tile:
    #    exercises the pl.when two-path row guard and the (TR, 1) reward broadcast.
    check(make_inputs(jax.random.PRNGKey(1), 4, 5, 33),
          dict(max_fold=1, max_tile_rows=8), 1e-5, 1e-5)

    # 3) narrow HBM streams (int16 token ids, bf16 logp/baseline), fold -> 128
    #    dense lanes, multi-tile grid + ragged tail.
    check(make_inputs(jax.random.PRNGKey(2), 64, 5, 8,
                      prob_dtype=jnp.bfloat16, seq_dtype=jnp.int16),
          dict(max_tile_rows=8), 1e-4, 1e-4)

    print("KERNEL_OK")
</pallas_src>

<mosaic_0001>
module attributes {stable_mosaic.version = 11 : i64} {
  func.func @_reinforce_tile_kernel(%arg0: i32, %arg1: memref<5x16xi32, #tpu.memory_space<vmem>>, %arg2: memref<5x16xf32, #tpu.memory_space<vmem>>, %arg3: memref<5x16xf32, #tpu.memory_space<vmem>>, %arg4: memref<5x2xf32, #tpu.memory_space<vmem>>, %arg5: memref<1x2x128xf32, #tpu.memory_space<vmem>>) attributes {dimension_semantics = [#tpu.dimension_semantics<parallel>], iteration_bounds = array<i64: 1>, scalar_prefetch = 0 : i64, scratch_operands = 0 : i64, tpu.core_type = #tpu.core_type<tc>, window_params = [{transform_indices = @transform_0, window_bounds = array<i64: 5, 16>}, {transform_indices = @transform_1, window_bounds = array<i64: 5, 16>}, {transform_indices = @transform_2, window_bounds = array<i64: 5, 16>}, {transform_indices = @transform_3, window_bounds = array<i64: 5, 2>}, {transform_indices = @transform_4, window_bounds = array<i64: 1, 2, 128>}]} {
    %c0 = arith.constant 0 : index
    %c0_0 = arith.constant 0 : index
    %0 = vector.load %arg1[%c0, %c0_0] : memref<5x16xi32, #tpu.memory_space<vmem>>, vector<5x16xi32>
    %c0_1 = arith.constant 0 : index
    %c0_2 = arith.constant 0 : index
    %1 = vector.load %arg2[%c0_1, %c0_2] : memref<5x16xf32, #tpu.memory_space<vmem>>, vector<5x16xf32>
    %c0_3 = arith.constant 0 : index
    %c0_4 = arith.constant 0 : index
    %2 = vector.load %arg3[%c0_3, %c0_4] : memref<5x16xf32, #tpu.memory_space<vmem>>, vector<5x16xf32>
    %c0_5 = arith.constant 0 : index
    %c0_6 = arith.constant 0 : index
    %3 = vector.load %arg4[%c0_5, %c0_6] : memref<5x2xf32, #tpu.memory_space<vmem>>, vector<5x2xf32>
    %4 = tpu.iota {dimensions = array<i32: 1>} : vector<2x16xi32>
    %5 = tpu.iota {dimensions = array<i32: 0>} : vector<2x16xi32>
    %c8_i32 = arith.constant 8 : i32
    %6 = vector.broadcast %c8_i32 : i32 to vector<2x16xi32>
    %7 = arith.muli %5, %6 : vector<2x16xi32>
    %8 = arith.cmpi sge, %4, %7 : vector<2x16xi32>
    %c8_i32_7 = arith.constant 8 : i32
    %9 = vector.broadcast %c8_i32_7 : i32 to vector<2x16xi32>
    %10 = arith.addi %7, %9 : vector<2x16xi32>
    %11 = arith.cmpi slt, %4, %10 : vector<2x16xi32>
    %12 = arith.andi %8, %11 : vector<2x16xi1>
    %13 = arith.extui %12 : vector<2x16xi1> to vector<2x16xi32>
    %14 = arith.sitofp %13 : vector<2x16xi32> to vector<2x16xf32>
    %15 = arith.cmpi eq, %4, %7 : vector<2x16xi32>
    %cst = arith.constant 1.000000e+00 : f32
    %cst_8 = arith.constant 0.000000e+00 : f32
    %16 = vector.broadcast %cst : f32 to vector<2x16xf32>
    %17 = vector.broadcast %cst_8 : f32 to vector<2x16xf32>
    %18 = arith.select %15, %16, %17 : vector<2x16xi1>, vector<2x16xf32>
    %cst_9 = arith.constant dense<0.000000e+00> : vector<16xf32>
    %19 = vector.multi_reduction <add>, %18, %cst_9 [0] : vector<2x16xf32> to vector<16xf32>
    %20 = vector.shape_cast %19 : vector<16xf32> to vector<1x16xf32>
    %cst_10 = arith.constant 5.000000e-01 : f32
    %21 = vector.broadcast %cst_10 : f32 to vector<1x16xf32>
    %22 = arith.cmpf ogt, %20, %21 : vector<1x16xf32>
    %cst_11 = arith.constant dense<0.000000e+00> : vector<5x16xf32>
    %23 = tpu.matmul %3, %14, %cst_11 {dimension_numbers = #tpu.dot_dimension_numbers<[1], [0], [0], [1], [0, 0, 1, 1], [], []>} : vector<5x2xf32>, vector<2x16xf32>, vector<5x16xf32> -> vector<5x16xf32>
    %c1_i32 = arith.constant 1 : i32
    %24 = tpu.dynamic_rotate %0 by %c1_i32 dim 1 : vector<5x16xi32>, i32 -> vector<5x16xi32>
    %c0_i32 = arith.constant 0 : i32
    %25 = vector.broadcast %c0_i32 : i32 to vector<5x16xi32>
    %26 = arith.cmpi sgt, %24, %25 : vector<5x16xi32>
    %27 = vector.broadcast %22 : vector<1x16xi1> to vector<5x16xi1>
    %28 = arith.ori %27, %26 : vector<5x16xi1>
    %29 = arith.subf %23, %2 : vector<5x16xf32>
    %30 = arith.subf %29, %1 : vector<5x16xf32>
    %31 = arith.mulf %29, %30 : vector<5x16xf32>
    %cst_12 = arith.constant 0.000000e+00 : f32
    %32 = vector.broadcast %cst_12 : f32 to vector<5x16xf32>
    %33 = arith.select %28, %31, %32 : vector<5x16xi1>, vector<5x16xf32>
    %34 = vector.shape_cast %33 : vector<5x16xf32> to vector<1x5x16xf32>
    %cst_13 = arith.constant dense<0.000000e+00> : vector<1xf32>
    %35 = vector.multi_reduction <add>, %34, %cst_13 [1, 2] : vector<1x5x16xf32> to vector<1xf32>
    %36 = vector.shape_cast %35 : vector<1xf32> to vector<1x1x1xf32>
    %37 = vector.extract %36[0, 0, 0] : f32 from vector<1x1x1xf32>
    %38 = arith.extui %28 : vector<5x16xi1> to vector<5x16xi32>
    %39 = arith.sitofp %38 : vector<5x16xi32> to vector<5x16xf32>
    %40 = vector.shape_cast %39 : vector<5x16xf32> to vector<1x5x16xf32>
    %cst_14 = arith.constant dense<0.000000e+00> : vector<1xf32>
    %41 = vector.multi_reduction <add>, %40, %cst_14 [1, 2] : vector<1x5x16xf32> to vector<1xf32>
    %42 = vector.shape_cast %41 : vector<1xf32> to vector<1x1x1xf32>
    %43 = vector.extract %42[0, 0, 0] : f32 from vector<1x1x1xf32>
    %44 = tpu.iota {dimensions = array<i32: 0>} : vector<2x128xi32>
    %c0_i32_15 = arith.constant 0 : i32
    %45 = vector.broadcast %c0_i32_15 : i32 to vector<2x128xi32>
    %46 = arith.cmpi eq, %44, %45 : vector<2x128xi32>
    %47 = vector.broadcast %37 : f32 to vector<2x128xf32>
    %48 = vector.broadcast %43 : f32 to vector<2x128xf32>
    %49 = arith.select %46, %47, %48 : vector<2x128xi1>, vector<2x128xf32>
    %c0_16 = arith.constant 0 : index
    %c0_17 = arith.constant 0 : index
    %c0_18 = arith.constant 0 : index
    %50 = vector.load %arg5[%c0_16, %c0_17, %c0_18] : memref<1x2x128xf32, #tpu.memory_space<vmem>>, vector<1x2x128xf32>
    %51 = vector.shape_cast %50 : vector<1x2x128xf32> to vector<2x128xf32>
    %52 = vector.shape_cast %49 : vector<2x128xf32> to vector<1x2x128xf32>
    tpu.vector_store %arg5[%c0_16, %c0_17, %c0_18], %52 {strides = array<i32>} : memref<1x2x128xf32, #tpu.memory_space<vmem>>, vector<1x2x128xf32>,
    return
  }
  func.func @transform_0(%arg0: i32) -> (i32, i32) {
    %c0_i32 = arith.constant 0 : i32
    %c0_i32_0 = arith.constant 0 : i32
    return %arg0, %c0_i32 : i32, i32
  }
  func.func @transform_1(%arg0: i32) -> (i32, i32) {
    %c0_i32 = arith.constant 0 : i32
    %c0_i32_0 = arith.constant 0 : i32
    return %arg0, %c0_i32 : i32, i32
  }
  func.func @transform_2(%arg0: i32) -> (i32, i32) {
    %c0_i32 = arith.constant 0 : i32
    %c0_i32_0 = arith.constant 0 : i32
    return %arg0, %c0_i32 : i32, i32
  }
  func.func @transform_3(%arg0: i32) -> (i32, i32) {
    %c0_i32 = arith.constant 0 : i32
    %c0_i32_0 = arith.constant 0 : i32
    return %arg0, %c0_i32 : i32, i32
  }
  func.func @transform_4(%arg0: i32) -> (i32, i32, i32) {
    %c0_i32 = arith.constant 0 : i32
    %c0_i32_0 = arith.constant 0 : i32
    %c0_i32_1 = arith.constant 0 : i32
    return %arg0, %c0_i32, %c0_i32_0 : i32, i32, i32
  }
}

</mosaic_0001>

<llo_original>
// kernel: tpu_custom_call.1
$region0: #{tpu_custom_call.1}
  #allocation0 [shape = 'u32[]', space=smem, size = 0x4, offset = 0x4, fixed_abs, tag = 'smem constant byte address 0x4 - core index']
  #allocation1 [shape = 'u32[144,128]{1,0:T(1,128)}', space=vmem, size = 0x12000, scoped, tag = 'internal scratch']
  %s0 = inlined_call_operand.hbm [shape: s32[5,16], index: 0, kind: input, shape index: {}]
  %s1 = inlined_call_operand.hbm [shape: f32[5,16], index: 1, kind: input, shape index: {}]
  %s2 = inlined_call_operand.hbm [shape: f32[5,16], index: 2, kind: input, shape index: {}]
  %s3 = inlined_call_operand.hbm [shape: f32[5,2], index: 3, kind: input, shape index: {}]
  %s4 = inlined_call_operand.hbm [shape: f32[1,2,128], index: 4, kind: output, shape index: {}]
  %s5 = sld [smem:[#allocation0]]
  $region42: #{tpu_custom_call.1} parent=0
    _
  %s7 = ssub.s32 1, %s5
  %s8 = scalar_select 0, %s7, %s5
  $region1: #{tpu_custom_call.1} parent=0
    #allocation2 [shape = 'u8[4096]{0}', space=vmem, size = 0x1000, scoped, tag = 'input window, operand 0, single buffered']
    #allocation3 [shape = 's32[1]{0}', space=sflag, size = 0x4, scoped, tag = 'scoped memory for tpu_custom_call.1']
    #allocation4 [shape = 's32[1]{0}', space=sflag, size = 0x4, scoped, tag = 'scoped memory for tpu_custom_call.1']
    #allocation5 [shape = 'u8[4096]{0}', space=vmem, size = 0x1000, scoped, tag = 'input window, operand 1, single buffered']
    #allocation6 [shape = 's32[1]{0}', space=sflag, size = 0x4, scoped, tag = 'scoped memory for tpu_custom_call.1']
    #allocation7 [shape = 'u8[4096]{0}', space=vmem, size = 0x1000, scoped, tag = 'input window, operand 2, single buffered']
    #allocation8 [shape = 'u8[4096]{0}', space=vmem, size = 0x1000, scoped, tag = 'input window, operand 3, single buffered']
    #allocation9 [shape = 's32[1]{0}', space=sflag, size = 0x4, scoped, tag = 'scoped memory for tpu_custom_call.1']
    #allocation10 [shape = 'u8[1024]{0}', space=vmem, size = 0x400, scoped, tag = 'output window, operand 0, single buffered']
    %9 = vsyncpa [#allocation3], 0
    %10 = vsyncpa [#allocation6], 0
    %11 = vsyncpa [#allocation9], 0
    %12 = vsyncpa [#allocation4], 0
    // Predicated region
    $region2: #{tpu_custom_call.1} parent=1 // pred_check
      _
    $region3: #{tpu_custom_call.1} parent=1 // pred_check_branch
      %14 = sbr.rel (0) target = $region5
    $region4: #{tpu_custom_call.1} parent=1 // pred_region
      %s16 = ssub.s32 128, 128
      %17 = vsyncadd [#allocation3], %s16
      %s19 = sshll.u32 [#allocation2], 4
      %s20 = int_to_ptr.vmem [resolvable:$true] %s19
      %22 = dma.hbm_to_vmem [thread:$0]  %s0, 128, %s20, [#allocation3]
    $region5: #{tpu_custom_call.1} parent=1 // pred_fallthru
      _
    // Predicated region
    $region6: #{tpu_custom_call.1} parent=1 // pred_check
      _
    $region7: #{tpu_custom_call.1} parent=1 // pred_check_branch
      %24 = sbr.rel (0) target = $region9
    $region8: #{tpu_custom_call.1} parent=1 // pred_region
      %s26 = ssub.s32 128, 128
      %27 = vsyncadd [#allocation6], %s26
      %s29 = sshll.u32 [#allocation5], 4
      %s30 = int_to_ptr.vmem [resolvable:$true] %s29
      %32 = dma.hbm_to_vmem [thread:$0]  %s1, 128, %s30, [#allocation6]
    $region9: #{tpu_custom_call.1} parent=1 // pred_fallthru
      _
    // Predicated region
    $region10: #{tpu_custom_call.1} parent=1 // pred_check
      _
    $region11: #{tpu_custom_call.1} parent=1 // pred_check_branch
      %34 = sbr.rel (0) target = $region13
    $region12: #{tpu_custom_call.1} parent=1 // pred_region
      %s36 = ssub.s32 128, 128
      %37 = vsyncadd [#allocation6], %s36
      %s39 = sshll.u32 [#allocation7], 4
      %s40 = int_to_ptr.vmem [resolvable:$true] %s39
      %42 = dma.hbm_to_vmem [thread:$0]  %s2, 128, %s40, [#allocation6]
    $region13: #{tpu_custom_call.1} parent=1 // pred_fallthru
      _
    // Predicated region
    $region14: #{tpu_custom_call.1} parent=1 // pred_check
      _
    $region15: #{tpu_custom_call.1} parent=1 // pred_check_branch
      %44 = sbr.rel (0) target = $region17
    $region16: #{tpu_custom_call.1} parent=1 // pred_region
      %s46 = ssub.s32 128, 128
      %47 = vsyncadd [#allocation9], %s46
      %s49 = sshll.u32 [#allocation8], 4
      %s50 = int_to_ptr.vmem [resolvable:$true] %s49
      %52 = dma.hbm_to_vmem [thread:$0]  %s3, 128, %s50, [#allocation9]
    $region17: #{tpu_custom_call.1} parent=1 // pred_fallthru
      _
    // Predicated region
    $region18: #{tpu_custom_call.1} parent=1 // pred_check
      _
    $region19: #{tpu_custom_call.1} parent=1 // pred_check_branch
      %54 = sbr.rel (0) target = $region21
    $region20: #{tpu_custom_call.1} parent=1 // pred_region
      %55 = dma.done [#allocation3], 128
    $region21: #{tpu_custom_call.1} parent=1 // pred_fallthru
      _
    // Predicated region
    $region22: #{tpu_custom_call.1} parent=1 // pred_check
      _
    $region23: #{tpu_custom_call.1} parent=1 // pred_check_branch
      %57 = sbr.rel (0) target = $region25
    $region24: #{tpu_custom_call.1} parent=1 // pred_region
      %58 = dma.done [#allocation6], 128
    $region25: #{tpu_custom_call.1} parent=1 // pred_fallthru
      _
    // Predicated region
    $region26: #{tpu_custom_call.1} parent=1 // pred_check
      _
    $region27: #{tpu_custom_call.1} parent=1 // pred_check_branch
      %60 = sbr.rel (0) target = $region29
    $region28: #{tpu_custom_call.1} parent=1 // pred_region
      %61 = dma.done [#allocation6], 128
    $region29: #{tpu_custom_call.1} parent=1 // pred_fallthru
      _
    // Predicated region
    $region30: #{tpu_custom_call.1} parent=1 // pred_check
      _
    $region31: #{tpu_custom_call.1} parent=1 // pred_check_branch
      %63 = sbr.rel (0) target = $region33
    $region32: #{tpu_custom_call.1} parent=1 // pred_region
      %64 = dma.done [#allocation9], 128
    $region33: #{tpu_custom_call.1} parent=1 // pred_fallthru
      _
    %v65 = vld [vmem:[#allocation2] sm:$0x1f]
    %v66 = vld [vmem:[#allocation5] sm:$0x1f]
    %v67 = vld [vmem:[#allocation7] sm:$0x1f]
    %v68 = vld [vmem:[#allocation8] sm:$0x1f]
    %v69 = vlaneseq
    %v70 = vand.u32 %v69, 127
    %v71 = vlaneseq
    %v72 = vshrl.u32 %v71, 7
    %v73 = vmul.u32 %v72, 8
    %vm74 = vcmp.ge.s32.totalorder %v70, %v73
    %v75 = vadd.s32 %v73, 8
    %vm76 = vcmp.lt.s32.totalorder %v70, %v75
    %vm77 = vmand %vm74, %vm76
    %v78 = vsel %vm77, 1, 0
    %v79 = vcvt.s32.f32 %v78
    %vm80 = vcmp.eq.s32.totalorder %v70, %v73
    %v81 = vsel %vm80, 1.0, 0.0
    %vm82 = vcmask 123904
    %v83 = vsel %vm82, %v81, 0.0
    %v84 = vrot.slane %v83, 4
    %v85 = vadd.f32 %v83, %v84
    %v86 = vrot.slane %v85, 2
    %v87 = vadd.f32 %v85, %v86
    %v88 = vrot.slane %v87, 1
    %v89 = vadd.f32 %v87, %v88
    %vm90 = vcmp.gt.f32.partialorder %v89, 0.5
    %vm91 = vcmask 15360
    %v93 = vsel %vm91, %v68, 0
    %vm95 = vcmask 1041408
    %v97 = vsel %vm95, %v79, 0
    %99 = vmatprep.subr.mxu0 0.0
    %100 = vmatpush1.msra.mxu0 %v97
    %101 = vmatprep.subr.mxu0 0.0
    %102 = vmatpush1.msra.mxu0 0.0
    %103 = vmatprep.subr.mxu0 0.0
    %104 = vmatpush1.msra.mxu0 0.0
    %105 = vmatprep.subr.mxu0 0.0
    %106 = vmatpush1.msra.mxu0 0.0
    %107 = vmatprep.subr.mxu0 0.0
    %108 = vmatpush1.msra.mxu0 0.0
    %109 = vmatprep.subr.mxu0 0.0
    %110 = vmatpush1.msra.mxu0 0.0
    %111 = vmatprep.subr.mxu0 0.0
    %112 = vmatpush1.msra.mxu0 0.0
    %113 = vmatprep.subr.mxu0 0.0
    %114 = vmatpush1.msra.mxu0 0.0
    %115 = vmatprep.subr.mxu0 0.0
    %116 = vmatpush1.msra.mxu0 0.0
    %117 = vmatprep.subr.mxu0 0.0
    %118 = vmatpush1.msra.mxu0 0.0
    %119 = vmatprep.subr.mxu0 0.0
    %120 = vmatpush1.msra.mxu0 0.0
    %121 = vmatprep.subr.mxu0 0.0
    %122 = vmatpush1.msra.mxu0 0.0
    %123 = vmatprep.subr.mxu0 0.0
    %124 = vmatpush1.msra.mxu0 0.0
    %125 = vmatprep.subr.mxu0 0.0
    %126 = vmatpush1.msra.mxu0 0.0
    %127 = vmatprep.subr.mxu0 0.0
    %128 = vmatpush1.msra.mxu0 0.0
    %129 = vmatprep.subr.mxu0 0.0
    %130 = vmatpush1.msra.mxu0 0.0
    %131 = vmatprep.subr.mxu0 0.0
    %132 = vmatpush1.msra.mxu0 0.0
    %133 = vmatprep.subr.mxu0 0.0
    %134 = vmatpush1.msra.mxu0 0.0
    %135 = vmatprep.subr.mxu0 0.0
    %136 = vmatpush1.msra.mxu0 0.0
    %137 = vmatprep.subr.mxu0 0.0
    %138 = vmatpush1.msra.mxu0 0.0
    %139 = vmatprep.subr.mxu0 0.0
    %140 = vmatpush1.msra.mxu0 0.0
    %141 = vmatprep.subr.mxu0 0.0
    %142 = vmatpush1.msra.mxu0 0.0
    %143 = vmatprep.subr.mxu0 0.0
    %144 = vmatpush1.msra.mxu0 0.0
    %145 = vmatprep.subr.mxu0 0.0
    %146 = vmatpush1.msra.mxu0 0.0
    %147 = vmatprep.subr.mxu0 0.0
    %148 = vmatpush1.msra.mxu0 0.0
    %149 = vmatprep.subr.mxu0 0.0
    %150 = vmatpush1.msra.mxu0 0.0
    %151 = vmatprep.subr.mxu0 0.0
    %152 = vmatpush1.msra.mxu0 0.0
    %153 = vmatprep.subr.mxu0 0.0
    %154 = vmatpush1.msra.mxu0 0.0
    %155 = vmatprep.subr.mxu0 0.0
    %156 = vmatpush1.msra.mxu0 0.0
    %157 = vmatprep.subr.mxu0 0.0
    %158 = vmatpush1.msra.mxu0 0.0
    %159 = vmatprep.subr.mxu0 0.0
    %160 = vmatpush1.msra.mxu0 0.0
    %161 = vmatprep.subr.mxu0 0.0
    %162 = vmatpush1.msra.mxu0 0.0
    %163 = vmatprep.mubr.f32.mxu0 0.0
    %164 = vmatmul.mubr.f32.gmra.mrb[0].mxu0 %v93
    %v165 = vpop.f32.mrb[0].mxu0
    %v166 = vadd.f32 0.0, %v165
    %v167 = vpop.f32.mrb[0].mxu0
    %168 = vdwg.mxu0
    %vm169 = vcmask 1047680
    %170 = vrot.lane.b32.xlu0 %v65, 16
    %v171 = vpop.permute.xlu0 %170
    %v172 = vsel %vm169, %v171, %v65
    %173 = vrot.lane.b32.xlu0 %v172, 16
    %v174 = vpop.permute.xlu0 %173
    %v175 = vsel %vm169, %v174, %v65
    %vm176 = vcmp.gt.s32.totalorder %v175, 0
    %v177 = vsel %vm90, 1, 0
    %vm178 = vcmp.eq.s32.totalorder %v177, 1
    %v179 = vsel %vm176, 1, 0
    %180 = vrot.lane.b32.xlu0 %v179, 113
    %v181 = vpop.permute.xlu0 %180
    %vm182 = vcmp.ne.s32.totalorder %v181, 0
    %vm183 = vmor %vm178, %vm182
    %v184 = vsub.f32 %v166, %v67
    %v185 = vsub.f32 %v184, %v66
    %v186 = vmul.f32 %v184, %v185
    %v187 = vsel %vm183, %v186, 0.0
    %vm188 = vcmask 126976
    %v189 = vsel %vm188, %v187, 0.0
    %190 = vadd.xlane.f32.xlu0 %v189
    %v191 = vpop.xlane.xlu0 %190
    %v192 = vrot.slane %v191, 4
    %v193 = vadd.f32 %v191, %v192
    %v194 = vrot.slane %v193, 2
    %v195 = vadd.f32 %v193, %v194
    %v196 = vrot.slane %v195, 1
    %v197 = vadd.f32 %v195, %v196
    %s198 = vtos %v197
    %v199 = vsel %vm183, 1, 0
    %v200 = vcvt.s32.f32 %v199
    %v201 = vsel %vm188, %v200, 0.0
    %202 = vadd.xlane.f32.xlu0 %v201
    %v203 = vpop.xlane.xlu0 %202
    %v204 = vrot.slane %v203, 4
    %v205 = vadd.f32 %v203, %v204
    %v206 = vrot.slane %v205, 2
    %v207 = vadd.f32 %v205, %v206
    %v208 = vrot.slane %v207, 1
    %v209 = vadd.f32 %v207, %v208
    %s210 = vtos %v209
    %vm211 = vcmp.eq.s32.totalorder %v72, 0
    %v212 = vstv %s198
    %v213 = vstv %s210
    %v214 = vsel %vm211, %v212, %v213
    %215 = vst [vmem:[#allocation10] sm:$0x3] %v214
    // Predicated region
    $region34: #{tpu_custom_call.1} parent=1 // pred_check
      _
    $region35: #{tpu_custom_call.1} parent=1 // pred_check_branch
      %217 = sbr.rel (0) target = $region37
    $region36: #{tpu_custom_call.1} parent=1 // pred_region
      %s219 = ssub.s32 32, 32
      %220 = vsyncadd [#allocation4], %s219
      %s222 = sshll.u32 [#allocation10], 4
      %s223 = int_to_ptr.vmem [resolvable:$true] %s222
      %225 = dma.vmem_to_hbm [thread:$0]  %s223, 32, %s4, [#allocation4]
    $region37: #{tpu_custom_call.1} parent=1 // pred_fallthru
      _
    // Predicated region
    $region38: #{tpu_custom_call.1} parent=1 // pred_check
      _
    $region39: #{tpu_custom_call.1} parent=1 // pred_check_branch
      %227 = sbr.rel (0) target = $region41
    $region40: #{tpu_custom_call.1} parent=1 // pred_region
      %228 = dma.done [#allocation4], 32
    $region41: #{tpu_custom_call.1} parent=1 // pred_fallthru
      _
    %229 = vsyncpa [#allocation3], 1
    %230 = vsyncpa [#allocation6], 1
    %231 = vsyncpa [#allocation9], 1
    %232 = vsyncpa [#allocation4], 1

</llo_original>
